<compile_context>
chip_gen: v6e
topology: v6e:2x2x1
jax: 0.10.0
libtpu: 0.0.40
codegen_flags: <defaults>
</compile_context>

<pallas_src>
import functools
import math

import jax
import jax.numpy as jnp
from jax import lax
from jax.experimental import pallas as pl
from jax.experimental.pallas import tpu as pltpu


def _round_up(x, m):
    return ((x + m - 1) // m) * m


# ----------------------------------------------------------------------------
# Kernels
# ----------------------------------------------------------------------------
def _dense_kernel(xc_ref, xh_ref, w_ref, b_ref, o_ref, *,
                  ksize, dilation, block_t):
    """Grouped/dense conv as one fused matmul per tile.

    xc_ref: (1, Cin, block_t)   current T tile
    xh_ref: (1, Cin, halo_w)    right halo (start of next tile / zero pad)
    w_ref : (block_co, K*Cin)   tap-fused weights
    b_ref : (block_co, 1)       f32 bias
    o_ref : (1, block_co, block_t)
    """
    x_ext = jnp.concatenate([xc_ref[0], xh_ref[0]], axis=1)   # (Cin, bt+halo)
    windows = [x_ext[:, k * dilation:k * dilation + block_t]
               for k in range(ksize)]
    x_stack = windows[0] if ksize == 1 else jnp.concatenate(windows, axis=0)
    y = jnp.dot(w_ref[...], x_stack, preferred_element_type=jnp.float32)
    o_ref[0] = (y + b_ref[...]).astype(o_ref.dtype)


def _depthwise_kernel(xc_ref, xh_ref, w_ref, b_ref, o_ref, *,
                      ksize, dilation, block_t):
    """Depthwise conv (groups == Cin == Cout): pure VPU multiply-adds.

    xc_ref: (1, block_co, block_t)
    xh_ref: (1, block_co, halo_w)
    w_ref : (K, block_co, 1)
    b_ref : (block_co, 1) f32
    o_ref : (1, block_co, block_t)
    """
    x_ext = jnp.concatenate([xc_ref[0], xh_ref[0]], axis=1).astype(jnp.float32)
    acc = jnp.broadcast_to(b_ref[...], o_ref.shape[1:]).astype(jnp.float32)
    for k in range(ksize):
        s = k * dilation
        acc = acc + w_ref[k].astype(jnp.float32) * x_ext[:, s:s + block_t]
    o_ref[0] = acc.astype(o_ref.dtype)


# ----------------------------------------------------------------------------
# Wrapper
# ----------------------------------------------------------------------------
def dilated_conv(x, weight, bias=None, *, stride=1, dilation=1, groups=1,
                 block_t=None):
    """x: (B, Cin, T); weight: (Cout, Cin//groups, K); bias: (Cout,) or None."""
    B, c_in, T = x.shape
    c_out, c_in_g, K = weight.shape
    if stride != 1:
        # TODO(synk): stride > 1 (down-sampling) not implemented in the kernel.
        raise NotImplementedError("stride > 1 not supported")
    assert c_in_g * groups == c_in and c_out % groups == 0

    pad = (K - 1) // 2 * dilation              # PyTorch Conv1d padding
    span = dilation * (K - 1)                  # max tap shift
    t_out = T + 2 * pad - span                 # PyTorch L_out (stride=1)

    depthwise = groups > 1 and groups == c_in and c_out == c_in

    # ---- tile sizing (per-generation VMEM aware) ----------------------------
    halo_w = max(128, _round_up(span, 128))    # right halo width, 128-aligned
    itm = jnp.dtype(x.dtype).itemsize

    try:
        vmem_cap = int(pltpu.get_tpu_info().vmem_capacity_bytes)
    except Exception:
        vmem_cap = 64 << 20                    # v7x per-core size: safe floor
    vmem_budget = vmem_cap // 2                # leave headroom for Mosaic

    # Output-channel tile keeps the f32 accumulator small for 512-ch configs.
    block_co = 256 if (c_out > 256 and c_out % 256 == 0) else c_out
    n_co = c_out // block_co
    c_x = block_co if depthwise else c_in      # x channels visible per step

    def footprint(bt):
        blocks = 2 * (c_x * (bt + halo_w) + block_co * bt) * itm  # dbl-buffered
        if depthwise:
            w_bytes = 2 * K * block_co * itm
            interm = (c_x * (bt + halo_w) + 2 * block_co * bt) * 4
        else:
            w_bytes = 2 * block_co * K * c_in * itm
            interm = ((c_x * (bt + halo_w) + K * c_in * bt) * itm
                      + 2 * block_co * bt * 4)
        return blocks + w_bytes + interm + 2 * block_co * 4

    if block_t is None:
        block_t = 1024 if itm >= 4 else 2048   # amortize ~0.35us/step overhead
    block_t = min(block_t, _round_up(pad + T, 128))   # never tile past data
    block_t = max(block_t, halo_w)
    block_t = _round_up(block_t, halo_w)       # halo index_map needs halo|bt
    while footprint(block_t) > vmem_budget and block_t > halo_w:
        block_t -= halo_w
    assert block_t >= halo_w and block_t % halo_w == 0

    n_t = -(-(pad + T) // block_t)
    r = block_t // halo_w
    total_len = n_t * block_t + halo_w         # extra zero halo on the right
    xp = jnp.pad(x, ((0, 0), (0, 0), (pad, total_len - pad - T)))

    b2d = (jnp.zeros((c_out,), jnp.float32) if bias is None
           else bias.astype(jnp.float32)).reshape(c_out, 1)

    vmem_limit = int(min(vmem_cap - (8 << 20),
                         max(32 << 20, 2 * footprint(block_t))))

    if depthwise:
        # (K, Cout, 1): per-tap per-channel scalars -- no block-diag blow-up.
        w_dw = jnp.transpose(weight[:, 0, :], (1, 0)).reshape(K, c_out, 1)
        w_dw = w_dw.astype(x.dtype)
        kernel = functools.partial(_depthwise_kernel, ksize=K,
                                   dilation=dilation, block_t=block_t)
        in_specs = [
            pl.BlockSpec((1, block_co, block_t), lambda b, co, j: (b, co, j)),
            pl.BlockSpec((1, block_co, halo_w),
                         lambda b, co, j: (b, co, (j + 1) * r)),
            pl.BlockSpec((K, block_co, 1), lambda b, co, j: (0, co, 0)),
            pl.BlockSpec((block_co, 1), lambda b, co, j: (co, 0)),
        ]
        args = (xp, xp, w_dw, b2d)
    else:
        if groups > 1:
            # Block-diagonal densification via a single vectorized scatter
            # (no per-group .at[].set trace blow-up).
            og = c_out // groups
            w_g = weight.reshape(groups, og, c_in_g, K)
            w_full = jnp.zeros((groups, og, groups, c_in_g, K), weight.dtype)
            gidx = jnp.arange(groups)
            w_full = w_full.at[gidx, :, gidx, :, :].set(w_g)
            weight = w_full.reshape(c_out, c_in, K)
        # (Cout, K*Cin): row-fused taps -> one deep MXU contraction per tile.
        w_fused = jnp.transpose(weight, (0, 2, 1)).reshape(c_out, K * c_in)
        w_fused = w_fused.astype(x.dtype)
        kernel = functools.partial(_dense_kernel, ksize=K,
                                   dilation=dilation, block_t=block_t)
        in_specs = [
            pl.BlockSpec((1, c_in, block_t), lambda b, co, j: (b, 0, j)),
            pl.BlockSpec((1, c_in, halo_w),
                         lambda b, co, j: (b, 0, (j + 1) * r)),
            pl.BlockSpec((block_co, K * c_in), lambda b, co, j: (co, 0)),
            pl.BlockSpec((block_co, 1), lambda b, co, j: (co, 0)),
        ]
        args = (xp, xp, w_fused, b2d)

    out = pl.pallas_call(
        kernel,
        out_shape=jax.ShapeDtypeStruct((B, c_out, n_t * block_t), x.dtype),
        grid_spec=pltpu.PrefetchScalarGridSpec(
            num_scalar_prefetch=0,
            grid=(B, n_co, n_t),
            in_specs=in_specs,
            out_specs=pl.BlockSpec((1, block_co, block_t),
                                   lambda b, co, j: (b, co, j)),
        ),
        compiler_params=pltpu.CompilerParams(
            dimension_semantics=("parallel", "parallel", "parallel"),
            vmem_limit_bytes=vmem_limit),
    )(*args)

    return out[:, :, :t_out]


# ----------------------------------------------------------------------------
# Pure-JAX reference of the PyTorch Conv1d forward
# ----------------------------------------------------------------------------
def dilated_conv_reference(x, weight, bias, *, stride=1, dilation=1, groups=1):
    K = weight.shape[-1]
    pad = (K - 1) // 2 * dilation
    y = lax.conv_general_dilated(
        x, weight, window_strides=(stride,), padding=[(pad, pad)],
        rhs_dilation=(dilation,),
        dimension_numbers=("NCH", "OIH", "NCH"),
        feature_group_count=groups,
        precision=lax.Precision.HIGHEST)
    if bias is not None:
        y = y + bias[None, :, None]
    return y


if __name__ == "__main__":
    key = jax.random.PRNGKey(0)

    def check(x, w, b, *, d, g, block_t=None):
        out = jax.block_until_ready(
            dilated_conv(x, w, b, dilation=d, groups=g, block_t=block_t))
        ref = dilated_conv_reference(x, w, b, dilation=d, groups=g)
        assert out.shape == ref.shape, (out.shape, ref.shape)
        err = float(jnp.max(jnp.abs(out - ref)))
        assert jnp.allclose(out, ref, atol=2e-3, rtol=2e-3), err

    # Config 1: dense (groups=1): 8 -> 16, k=5, d=2, T=600; block_t=256 forces
    # a multi-tile grid so the halo splice across T tiles is exercised.
    B, c_in, c_out, K, d, T = 2, 8, 16, 5, 2, 600
    k1, k2, k3, key = jax.random.split(key, 4)
    bound = 1.0 / math.sqrt(c_in * K)
    x = jax.random.normal(k1, (B, c_in, T), jnp.float32)
    w = jax.random.uniform(k2, (c_out, c_in, K), jnp.float32, -bound, bound)
    b = jax.random.uniform(k3, (c_out,), jnp.float32, -bound, bound)
    check(x, w, b, d=d, g=1, block_t=256)

    # Config 2: depthwise fast path: 32 -> 32, k=5, d=1, groups=32, T=96.
    c2, K2, d2, g2, T2 = 32, 5, 1, 32, 96
    k4, k5, k6, key = jax.random.split(key, 4)
    bound2 = 1.0 / math.sqrt((c2 // g2) * K2)
    x2 = jax.random.normal(k4, (B, c2, T2), jnp.float32)
    w2 = jax.random.uniform(k5, (c2, c2 // g2, K2), jnp.float32, -bound2, bound2)
    b2 = jax.random.uniform(k6, (c2,), jnp.float32, -bound2, bound2)
    check(x2, w2, b2, d=d2, g=g2)

    # Config 3: grouped (1 < groups < Cin) block-diagonal path:
    # 16 -> 16, k=3, d=8, groups=4, T=300 (non-128-multiple length).
    c3, K3, d3, g3, T3 = 16, 3, 8, 4, 300
    k7, k8, k9, key = jax.random.split(key, 4)
    bound3 = 1.0 / math.sqrt((c3 // g3) * K3)
    x3 = jax.random.normal(k7, (B, c3, T3), jnp.float32)
    w3 = jax.random.uniform(k8, (c3, c3 // g3, K3), jnp.float32, -bound3, bound3)
    b3 = jax.random.uniform(k9, (c3,), jnp.float32, -bound3, bound3)
    check(x3, w3, b3, d=d3, g=g3)

    print("KERNEL_OK")
</pallas_src>

<mosaic_0001>
module attributes {stable_mosaic.version = 11 : i64} {
  func.func @_dense_kernel(%arg0: i32, %arg1: i32, %arg2: i32, %arg3: memref<1x8x256xf32, #tpu.memory_space<vmem>>, %arg4: memref<1x8x128xf32, #tpu.memory_space<vmem>>, %arg5: memref<16x40xf32, #tpu.memory_space<vmem>>, %arg6: memref<16x1xf32, #tpu.memory_space<vmem>>, %arg7: memref<1x16x256xf32, #tpu.memory_space<vmem>>) attributes {dimension_semantics = [#tpu.dimension_semantics<parallel>, #tpu.dimension_semantics<parallel>, #tpu.dimension_semantics<parallel>], iteration_bounds = array<i64: 2, 1, 3>, scalar_prefetch = 0 : i64, scratch_operands = 0 : i64, tpu.core_type = #tpu.core_type<tc>, window_params = [{transform_indices = @transform_0, window_bounds = array<i64: 1, 8, 256>}, {transform_indices = @transform_1, window_bounds = array<i64: 1, 8, 128>}, {transform_indices = @transform_2, window_bounds = array<i64: 16, 40>}, {transform_indices = @transform_3, window_bounds = array<i64: 16, 1>}, {transform_indices = @transform_4, window_bounds = array<i64: 1, 16, 256>}]} {
    %c0 = arith.constant 0 : index
    %c0_0 = arith.constant 0 : index
    %c0_1 = arith.constant 0 : index
    %0 = vector.load %arg3[%c0, %c0_0, %c0_1] : memref<1x8x256xf32, #tpu.memory_space<vmem>>, vector<1x8x256xf32>
    %1 = vector.shape_cast %0 : vector<1x8x256xf32> to vector<8x256xf32>
    %c0_2 = arith.constant 0 : index
    %c0_3 = arith.constant 0 : index
    %c0_4 = arith.constant 0 : index
    %2 = vector.load %arg4[%c0_2, %c0_3, %c0_4] : memref<1x8x128xf32, #tpu.memory_space<vmem>>, vector<1x8x128xf32>
    %3 = vector.shape_cast %2 : vector<1x8x128xf32> to vector<8x128xf32>
    %4 = tpu.concatenate %1, %3 in 1 : vector<8x256xf32>, vector<8x128xf32> -> vector<8x384xf32>
    %5 = vector.extract_strided_slice %4 {offsets = [0, 0], sizes = [8, 256], strides = [1, 1]} : vector<8x384xf32> to vector<8x256xf32>
    %6 = vector.extract_strided_slice %4 {offsets = [0, 2], sizes = [8, 256], strides = [1, 1]} : vector<8x384xf32> to vector<8x256xf32>
    %7 = vector.extract_strided_slice %4 {offsets = [0, 4], sizes = [8, 256], strides = [1, 1]} : vector<8x384xf32> to vector<8x256xf32>
    %8 = vector.extract_strided_slice %4 {offsets = [0, 6], sizes = [8, 256], strides = [1, 1]} : vector<8x384xf32> to vector<8x256xf32>
    %9 = vector.extract_strided_slice %4 {offsets = [0, 8], sizes = [8, 256], strides = [1, 1]} : vector<8x384xf32> to vector<8x256xf32>
    %10 = tpu.concatenate %5, %6, %7, %8, %9 in 0 : vector<8x256xf32>, vector<8x256xf32>, vector<8x256xf32>, vector<8x256xf32>, vector<8x256xf32> -> vector<40x256xf32>
    %c0_5 = arith.constant 0 : index
    %c0_6 = arith.constant 0 : index
    %11 = vector.load %arg5[%c0_5, %c0_6] : memref<16x40xf32, #tpu.memory_space<vmem>>, vector<16x40xf32>
    %cst = arith.constant dense<0.000000e+00> : vector<16x256xf32>
    %12 = tpu.matmul %11, %10, %cst {dimension_numbers = #tpu.dot_dimension_numbers<[1], [0], [0], [1], [0, 0, 1, 1], [], []>} : vector<16x40xf32>, vector<40x256xf32>, vector<16x256xf32> -> vector<16x256xf32>
    %c0_7 = arith.constant 0 : index
    %c0_8 = arith.constant 0 : index
    %13 = vector.load %arg6[%c0_7, %c0_8] : memref<16x1xf32, #tpu.memory_space<vmem>>, vector<16x1xf32>
    %14 = vector.broadcast %13 : vector<16x1xf32> to vector<16x256xf32>
    %15 = arith.addf %12, %14 : vector<16x256xf32>
    %c0_9 = arith.constant 0 : index
    %c0_10 = arith.constant 0 : index
    %c0_11 = arith.constant 0 : index
    %16 = vector.load %arg7[%c0_9, %c0_10, %c0_11] : memref<1x16x256xf32, #tpu.memory_space<vmem>>, vector<1x16x256xf32>
    %17 = vector.shape_cast %16 : vector<1x16x256xf32> to vector<16x256xf32>
    %18 = vector.shape_cast %15 : vector<16x256xf32> to vector<1x16x256xf32>
    tpu.vector_store %arg7[%c0_9, %c0_10, %c0_11], %18 {strides = array<i32>} : memref<1x16x256xf32, #tpu.memory_space<vmem>>, vector<1x16x256xf32>,
    return
  }
  func.func @transform_0(%arg0: i32, %arg1: i32, %arg2: i32) -> (i32, i32, i32) {
    %c0_i32 = arith.constant 0 : i32
    %c0_i32_0 = arith.constant 0 : i32
    return %arg0, %c0_i32, %arg2 : i32, i32, i32
  }
  func.func @transform_1(%arg0: i32, %arg1: i32, %arg2: i32) -> (i32, i32, i32) {
    %c1_i32 = arith.constant 1 : i32
    %0 = arith.addi %arg2, %c1_i32 : i32
    %c2_i32 = arith.constant 2 : i32
    %1 = arith.muli %0, %c2_i32 : i32
    %c0_i32 = arith.constant 0 : i32
    %c0_i32_0 = arith.constant 0 : i32
    return %arg0, %c0_i32, %1 : i32, i32, i32
  }
  func.func @transform_2(%arg0: i32, %arg1: i32, %arg2: i32) -> (i32, i32) {
    %c0_i32 = arith.constant 0 : i32
    %c0_i32_0 = arith.constant 0 : i32
    return %arg1, %c0_i32 : i32, i32
  }
  func.func @transform_3(%arg0: i32, %arg1: i32, %arg2: i32) -> (i32, i32) {
    %c0_i32 = arith.constant 0 : i32
    %c0_i32_0 = arith.constant 0 : i32
    return %arg1, %c0_i32 : i32, i32
  }
  func.func @transform_4(%arg0: i32, %arg1: i32, %arg2: i32) -> (i32, i32, i32) {
    %c0_i32 = arith.constant 0 : i32
    return %arg0, %arg1, %arg2 : i32, i32, i32
  }
}

</mosaic_0001>

<llo_original>
// kernel: tpu_custom_call.1
$region0: #{tpu_custom_call.1}
  #allocation0 [shape = 'u32[]', space=smem, size = 0x4, offset = 0x4, fixed_abs, tag = 'smem constant byte address 0x4 - core index']
  #allocation1 [shape = 'u32[144,128]{1,0:T(1,128)}', space=vmem, size = 0x12000, scoped, tag = 'internal scratch']
  %s0 = inlined_call_operand.hbm [shape: f32[2,8,896], index: 0, kind: input, shape index: {}]
  %s1 = inlined_call_operand.hbm [shape: f32[2,8,896], index: 1, kind: input, shape index: {}]
  %s2 = inlined_call_operand.vmem [shape: f32[16,40], index: 2, kind: input, shape index: {}]
  %s3 = inlined_call_operand.vmem [shape: f32[16,1], index: 3, kind: input, shape index: {}]
  %s4 = inlined_call_operand.hbm [shape: f32[2,16,768], index: 4, kind: output, shape index: {}]
  %s5 = sld [smem:[#allocation0]]
  $region57: #{tpu_custom_call.1} parent=0
    _
  %s7 = ssub.s32 1, %s5
  %s8 = scalar_select 0, %s7, %s5
  $region1: #{tpu_custom_call.1} parent=0
    #allocation2 [shape = 'u8[16384]{0}', space=vmem, size = 0x4000, scoped, tag = 'input window, operand 0']
    #allocation3 [shape = 's32[2]{0}', space=sflag, size = 0x8, scoped, tag = 'scoped memory for tpu_custom_call.1']
    #allocation4 [shape = 's32[2]{0}', space=sflag, size = 0x8, scoped, tag = 'scoped memory for tpu_custom_call.1']
    #allocation5 [shape = 'u8[8192]{0}', space=vmem, size = 0x2000, scoped, tag = 'input window, operand 1']
    #allocation6 [shape = 's32[2]{0}', space=sflag, size = 0x8, scoped, tag = 'scoped memory for tpu_custom_call.1']
    #allocation7 [shape = 'u8[32768]{0}', space=vmem, size = 0x8000, scoped, tag = 'output window, operand 0']
    %9 = vsyncpa [#allocation3], 0
    %s10 = scalar_lea.sflag [#allocation3], 1
    %11 = vsyncpa %s10, 0
    %12 = vsyncpa [#allocation6], 0
    %s13 = scalar_lea.sflag [#allocation6], 1
    %14 = vsyncpa %s13, 0
    %15 = vsyncpa [#allocation4], 0
    %s16 = scalar_lea.sflag [#allocation4], 1
    %17 = vsyncpa %s16, 0
    loop: start=0, step=1, limit=8
    $region2: #{tpu_custom_call.1} parent=1 // loop_pre_header
      _
    $region3: #{tpu_custom_call.1} parent=1 // loop_header
      %s19 = sphi 0, %s23
      %p20 = scmp.ge.s32.totalorder %s19, 8
      %s26 = sphi 0, %s45
      %s27 = sphi 0, %s41
      %s28 = sphi 0, %s37
      %s29 = sphi 0, %s26
      %s30 = sphi 0, %s27
      %s31 = sphi 0, %s28
      %s32 = sphi 0, %s29
      %s33 = sphi 0, %s30
      %s34 = sphi 0, %s31
      %s50 = sphi 0, %s52
      %s53 = sphi 0, %s50
      %s54 = sphi 0, %s53
      %s70 = sphi 0, %s54
      %s82 = sphi 0, %s84
      %s85 = sphi 0, %s82
      %s86 = sphi 0, %s85
      %s102 = sphi 0, %s86
      %s108 = sphi 0, %s110
      %s111 = sphi 0, %s108
      %s112 = sphi 0, %s111
      %s128 = sphi 0, %s112
      %s134 = sphi 0, %s136
      %s137 = sphi 0, %s134
      %s138 = sphi 0, %s137
      %s154 = sphi 0, %s138
      %s164 = sphi 0, %s166
      %s167 = sphi 0, %s164
      %s168 = sphi 0, %s167
      %s184 = sphi 0, %s168
    $region4: #{tpu_custom_call.1} parent=1 // loop_header_branch
      %22 = sbr.rel (%p20) target = $region8
    $region5: #{tpu_custom_call.1} parent=1 // loop_body
      %s24 = ssub.s32 %s19, 1
      %s25 = ssub.s32 %s19, 2
      %s35 = sadd.s32 1, %s28
      %p36 = scmp.ge.s32.totalorder %s35, 3
      %s37 = scalar_select %p36, 0, %s35
      %s38 = sadd.s32 1, %s27
      %s39 = scalar_select %p36, %s38, %s27
      %p40 = scmp.ge.s32.totalorder %s39, 1
      %s41 = scalar_select %p40, 0, %s39
      %s42 = sadd.s32 1, %s26
      %s43 = scalar_select %p40, %s42, %s26
      %p44 = scmp.ge.s32.totalorder %s43, 2
      %s45 = scalar_select %p44, 0, %s43
      %s46 = ssub.s32 %s26, %s45
      %s47 = ssub.s32 %s28, %s37
      %s48 = sor.u32 %s46, %s47
      %p49 = scmp.eq.s32.totalorder %s48, 0
      %s51 = sadd.s32 %s50, 1
      %s52 = scalar_select %p49, %s50, %s51
      %p55 = pneg %p49
      %p56 = scmp.eq.s32.totalorder %s19, 5
      %p57 = por %p55, %p56
      %p58 = scmp.ne.s32.totalorder %s50, %s53
      %p59 = scmp.eq.s32.totalorder %s19, 0
      %p60 = por %p58, %p59
      %p61 = scmp.ne.s32.totalorder %s50, %s53
      %p62 = scmp.eq.s32.totalorder %s24, 5
      %p63 = por %p61, %p62
      %p64 = scmp.ne.s32.totalorder %s53, %s54
      %p65 = scmp.eq.s32.totalorder %s24, 0
      %p66 = por %p64, %p65
      %p67 = scmp.ne.s32.totalorder %s53, %s54
      %p68 = scmp.eq.s32.totalorder %s25, 5
      %p69 = por %p67, %p68
      %p71 = scmp.ne.s32.totalorder %s54, %s70
      %p72 = scmp.eq.s32.totalorder %s25, 0
      %p73 = por %p71, %p72
      %s74 = sadd.s32 %s28, 1
      %s75 = smul.u32 %s74, 2
      %s76 = sadd.s32 %s37, 1
      %s77 = smul.u32 %s76, 2
      %s78 = ssub.s32 %s26, %s45
      %s79 = ssub.s32 %s75, %s77
      %s80 = sor.u32 %s78, %s79
      %p81 = scmp.eq.s32.totalorder %s80, 0
      %s83 = sadd.s32 %s82, 1
      %s84 = scalar_select %p81, %s82, %s83
      %p87 = pneg %p81
      %p88 = scmp.eq.s32.totalorder %s19, 5
      %p89 = por %p87, %p88
      %p90 = scmp.ne.s32.totalorder %s82, %s85
      %p91 = scmp.eq.s32.totalorder %s19, 0
      %p92 = por %p90, %p91
      %p93 = scmp.ne.s32.totalorder %s82, %s85
      %p94 = scmp.eq.s32.totalorder %s24, 5
      %p95 = por %p93, %p94
      %p96 = scmp.ne.s32.totalorder %s85, %s86
      %p97 = scmp.eq.s32.totalorder %s24, 0
      %p98 = por %p96, %p97
      %p99 = scmp.ne.s32.totalorder %s85, %s86
      %p100 = scmp.eq.s32.totalorder %s25, 5
      %p101 = por %p99, %p100
      %p103 = scmp.ne.s32.totalorder %s86, %s102
      %p104 = scmp.eq.s32.totalorder %s25, 0
      %p105 = por %p103, %p104
      %s106 = ssub.s32 %s27, %s41
      %p107 = scmp.eq.s32.totalorder %s106, 0
      %s109 = sadd.s32 %s108, 1
      %s110 = scalar_select %p107, %s108, %s109
      %p113 = pneg %p107
      %p114 = scmp.eq.s32.totalorder %s19, 5
      %p115 = por %p113, %p114
      %p116 = scmp.ne.s32.totalorder %s108, %s111
      %p117 = scmp.eq.s32.totalorder %s19, 0
      %p118 = por %p116, %p117
      %p119 = scmp.ne.s32.totalorder %s108, %s111
      %p120 = scmp.eq.s32.totalorder %s24, 5
      %p121 = por %p119, %p120
      %p122 = scmp.ne.s32.totalorder %s111, %s112
      %p123 = scmp.eq.s32.totalorder %s24, 0
      %p124 = por %p122, %p123
      %p125 = scmp.ne.s32.totalorder %s111, %s112
      %p126 = scmp.eq.s32.totalorder %s25, 5
      %p127 = por %p125, %p126
      %p129 = scmp.ne.s32.totalorder %s112, %s128
      %p130 = scmp.eq.s32.totalorder %s25, 0
      %p131 = por %p129, %p130
      %s132 = ssub.s32 %s27, %s41
      %p133 = scmp.eq.s32.totalorder %s132, 0
      %s135 = sadd.s32 %s134, 1
      %s136 = scalar_select %p133, %s134, %s135
      %p139 = pneg %p133
      %p140 = scmp.eq.s32.totalorder %s19, 5
      %p141 = por %p139, %p140
      %p142 = scmp.ne.s32.totalorder %s134, %s137
      %p143 = scmp.eq.s32.totalorder %s19, 0
      %p144 = por %p142, %p143
      %p145 = scmp.ne.s32.totalorder %s134, %s137
      %p146 = scmp.eq.s32.totalorder %s24, 5
      %p147 = por %p145, %p146
      %p148 = scmp.ne.s32.totalorder %s137, %s138
      %p149 = scmp.eq.s32.totalorder %s24, 0
      %p150 = por %p148, %p149
      %p151 = scmp.ne.s32.totalorder %s137, %s138
      %p152 = scmp.eq.s32.totalorder %s25, 5
      %p153 = por %p151, %p152
      %p155 = scmp.ne.s32.totalorder %s138, %s154
      %p156 = scmp.eq.s32.totalorder %s25, 0
      %p157 = por %p155, %p156
      %s158 = ssub.s32 %s26, %s45
      %s159 = ssub.s32 %s27, %s41
      %s160 = sor.u32 %s158, %s159
      %s161 = ssub.s32 %s28, %s37
      %s162 = sor.u32 %s160, %s161
      %p163 = scmp.eq.s32.totalorder %s162, 0
      %s165 = sadd.s32 %s164, 1
      %s166 = scalar_select %p163, %s164, %s165
      %p169 = pneg %p163
      %p170 = scmp.eq.s32.totalorder %s19, 5
      %p171 = por %p169, %p170
      %p172 = scmp.ne.s32.totalorder %s164, %s167
      %p173 = scmp.eq.s32.totalorder %s19, 0
      %p174 = por %p172, %p173
      %p175 = scmp.ne.s32.totalorder %s164, %s167
      %p176 = scmp.eq.s32.totalorder %s24, 5
      %p177 = por %p175, %p176
      %p178 = scmp.ne.s32.totalorder %s167, %s168
      %p179 = scmp.eq.s32.totalorder %s24, 0
      %p180 = por %p178, %p179
      %p181 = scmp.ne.s32.totalorder %s167, %s168
      %p182 = scmp.eq.s32.totalorder %s25, 5
      %p183 = por %p181, %p182
      %p185 = scmp.ne.s32.totalorder %s168, %s184
      %p186 = scmp.eq.s32.totalorder %s25, 0
      %p187 = por %p185, %p186
      %p188 = scmp.le.s32.totalorder 1, %s19
      %p189 = scmp.lt.s32.totalorder %s19, 7
      %p190 = pnand %p188, %p189
      %p191 = pneg %p190
      // Predicated region
      $region9: #{tpu_custom_call.1} parent=5 // pred_check
        _
      $region10: #{tpu_custom_call.1} parent=5 // pred_check_branch
        %193 = sbr.rel (%p190) target = $region12
      $region11: #{tpu_custom_call.1} parent=5 // pred_region
        %s194 = ssub.s32 %s19, 1
        // Predicated region
        $region13: #{tpu_custom_call.1} parent=11 // pred_check
          %p195 = pneg %p124
        $region14: #{tpu_custom_call.1} parent=11 // pred_check_branch
          %197 = sbr.rel (%p195) target = $region16
        $region15: #{tpu_custom_call.1} parent=11 // pred_region
          %s198 = smul.u32 2, %s30
          %p199 = scmp.lt.s32.totalorder %s198, 1
          %s200 = scalar_select %p199, %s198, 1
          %s201 = smul.addr %s200, 8
          %s202 = scalar_lea.vmem %s2, %s201
          %s203 = smul.u32 2, %s30
        $region16: #{tpu_custom_call.1} parent=11 // pred_fallthru
          _
        // Predicated region
        $region17: #{tpu_custom_call.1} parent=11 // pred_check
          %p204 = pneg %p150
        $region18: #{tpu_custom_call.1} parent=11 // pred_check_branch
          %206 = sbr.rel (%p204) target = $region20
        $region19: #{tpu_custom_call.1} parent=11 // pred_region
          %s207 = smul.u32 2, %s30
          %p208 = scmp.lt.s32.totalorder %s207, 1
          %s209 = scalar_select %p208, %s207, 1
          %s210 = smul.addr %s209, 8
          %s211 = scalar_lea.vmem %s3, %s210
          %s212 = smul.u32 2, %s30
        $region20: #{tpu_custom_call.1} parent=11 // pred_fallthru
          _
      $region12: #{tpu_custom_call.1} parent=5 // pred_fallthru
        _
      %p213 = scmp.lt.s32.totalorder %s19, 6
      // Predicated region
      $region21: #{tpu_custom_call.1} parent=5 // pred_check
        %p214 = pneg %p213
      $region22: #{tpu_custom_call.1} parent=5 // pred_check_branch
        %216 = sbr.rel (%p214) target = $region24
      $region23: #{tpu_custom_call.1} parent=5 // pred_region
        // Predicated region
        $region25: #{tpu_custom_call.1} parent=23 // pred_check
          %p217 = pneg %p60
        $region26: #{tpu_custom_call.1} parent=23 // pred_check_branch
          %219 = sbr.rel (%p217) target = $region28
        $region27: #{tpu_custom_call.1} parent=23 // pred_region
          %s220 = sand.u32 %s50, 1
          %s221 = scalar_lea.sflag [#allocation3], %s220
          %s222 = sand.u32 %s50, 1
          %s223 = smul.addr %s222, 16
          %s224 = scalar_lea.vmem [#allocation2], %s223
          %s225 = smul.u32 2, %s28
          %s226 = ssub.s32 7, %s225
          %p227 = scmp.lt.s32.totalorder %s226, 2
          %s228 = scalar_select %p227, %s226, 2
          %s229 = smul.u32 128, %s228
          %s231 = ssub.s32 256, %s229
          %232 = vsyncadd %s221, %s231
          %p233 = scmp.ne.s32.totalorder 0, %s229
          %s234 = smul.addr %s26, 7
          %s235 = sadd.s32 %s225, %s234
          %s236 = smul.addr %s235, 128
          %s237 = scalar_lea.hbm %s0, %s236
          %s238 = smul.u32 %s228, 8
          %s239 = sshll.u32 %s238, 4
          %s240 = sshll.u32 %s224, 4
          %s241 = int_to_ptr.vmem [resolvable:$true] %s240
          %243 = dma.hbm_to_vmem [thread:$0]  (%p233), %s237, %s239, %s241, %s221
        $region28: #{tpu_custom_call.1} parent=23 // pred_fallthru
          _
        // Predicated region
        $region29: #{tpu_custom_call.1} parent=23 // pred_check
          %p244 = pneg %p92
        $region30: #{tpu_custom_call.1} parent=23 // pred_check_branch
          %246 = sbr.rel (%p244) target = $region32
        $region31: #{tpu_custom_call.1} parent=23 // pred_region
          %s247 = sand.u32 %s82, 1
          %s248 = scalar_lea.sflag [#allocation6], %s247
          %s249 = sand.u32 %s82, 1
          %s250 = smul.addr %s249, 8
          %s251 = scalar_lea.vmem [#allocation5], %s250
          %s252 = sadd.s32 %s28, 1
          %s253 = smul.u32 %s252, 2
          %s255 = ssub.s32 128, 128
          %256 = vsyncadd %s248, %s255
          %s257 = smul.addr %s26, 7
          %s258 = sadd.s32 %s253, %s257
          %s259 = smul.addr %s258, 128
          %s260 = scalar_lea.hbm %s1, %s259
          %s262 = sshll.u32 %s251, 4
          %s263 = int_to_ptr.vmem [resolvable:$true] %s262
          %265 = dma.hbm_to_vmem [thread:$0]  %s260, 128, %s263, %s248
        $region32: #{tpu_custom_call.1} parent=23 // pred_fallthru
          _
      $region24: #{tpu_custom_call.1} parent=5 // pred_fallthru
        _
      %p266 = scmp.le.s32.totalorder 1, %s19
      %p267 = scmp.lt.s32.totalorder %s19, 7
      %p268 = pnand %p266, %p267
      %p269 = pneg %p268
      // Predicated region
      $region33: #{tpu_custom_call.1} parent=5 // pred_check
        _
      $region34: #{tpu_custom_call.1} parent=5 // pred_check_branch
        %271 = sbr.rel (%p268) target = $region36
      $region35: #{tpu_custom_call.1} parent=5 // pred_region
        %s272 = ssub.s32 %s19, 1
        %s273 = sand.u32 %s53, 1
        %s274 = scalar_lea.sflag [#allocation3], %s273
        %s275 = sand.u32 %s53, 1
        %s276 = smul.addr %s275, 16
        %s277 = scalar_lea.vmem [#allocation2], %s276
        // Predicated region
        $region37: #{tpu_custom_call.1} parent=35 // pred_check
          %p278 = pneg %p66
        $region38: #{tpu_custom_call.1} parent=35 // pred_check_branch
          %280 = sbr.rel (%p278) target = $region40
        $region39: #{tpu_custom_call.1} parent=35 // pred_region
          %281 = dma.done %s274, 256
        $region40: #{tpu_custom_call.1} parent=35 // pred_fallthru
          _
        %s282 = sand.u32 %s85, 1
        %s283 = scalar_lea.sflag [#allocation6], %s282
        %s284 = sand.u32 %s85, 1
        %s285 = smul.addr %s284, 8
        %s286 = scalar_lea.vmem [#allocation5], %s285
        // Predicated region
        $region41: #{tpu_custom_call.1} parent=35 // pred_check
          %p287 = pneg %p98
        $region42: #{tpu_custom_call.1} parent=35 // pred_check_branch
          %289 = sbr.rel (%p287) target = $region44
        $region43: #{tpu_custom_call.1} parent=35 // pred_region
          %290 = dma.done %s283, 128
        $region44: #{tpu_custom_call.1} parent=35 // pred_fallthru
          _
        %s291 = sand.u32 %s53, 1
        %s292 = scalar_lea.sflag [#allocation3], %s291
        %s293 = sand.u32 %s53, 1
        %s294 = smul.addr %s293, 16
        %s295 = scalar_lea.vmem [#allocation2], %s294
        %p296 = pneg %p66
        %p297 = pneg %p63
        %s298 = sand.u32 %s85, 1
        %s299 = scalar_lea.sflag [#allocation6], %s298
        %s300 = sand.u32 %s85, 1
        %s301 = smul.addr %s300, 8
        %s302 = scalar_lea.vmem [#allocation5], %s301
        %p303 = pneg %p98
        %p304 = pneg %p95
        %s305 = smul.u32 2, %s30
        %p306 = scmp.lt.s32.totalorder %s305, 1
        %s307 = scalar_select %p306, %s305, 1
        %s308 = smul.addr %s307, 8
        %s309 = scalar_lea.vmem %s2, %s308
        %p310 = pneg %p124
        %p311 = pneg %p121
        %s312 = smul.u32 2, %s30
        %p313 = scmp.lt.s32.totalorder %s312, 1
        %s314 = scalar_select %p313, %s312, 1
        %s315 = smul.addr %s314, 8
        %s316 = scalar_lea.vmem %s3, %s315
        %p317 = pneg %p150
        %p318 = pneg %p147
        %p319 = pneg %p180
        %p320 = pneg %p177
        %s321 = sand.u32 %s167, 1
        %s322 = scalar_lea.sflag [#allocation4], %s321
        %s323 = sand.u32 %s167, 1
        %s324 = smul.addr %s323, 32
        %s325 = scalar_lea.vmem [#allocation7], %s324
        %s326 = smul.u32 2, %s31
        %s327 = ssub.s32 7, %s326
        %p328 = scmp.lt.s32.totalorder %s327, 2
        %s329 = scalar_select %p328, %s327, 2
        %s330 = smul.u32 128, %s329
        %s331 = sadd.s32 %s31, 1
        %s332 = smul.u32 %s331, 2
        %s333 = smul.u32 2, %s30
        %p334 = scmp.lt.s32.totalorder %s333, 1
        %s335 = scalar_select %p334, %s333, 1
        %s336 = smul.addr %s335, 8
        %s337 = scalar_lea.vmem %s2, %s336
        %s338 = smul.u32 2, %s30
        %s339 = smul.u32 2, %s30
        %p340 = scmp.lt.s32.totalorder %s339, 1
        %s341 = scalar_select %p340, %s339, 1
        %s342 = smul.addr %s341, 8
        %s343 = scalar_lea.vmem %s3, %s342
        %s344 = smul.u32 2, %s30
        %s345 = smul.u32 2, %s30
        %s346 = smul.u32 2, %s31
        %v347 = vld [vmem:[%s277] sm:$0xff]
        %v348 = vld [vmem:[%s277 + $0x8] sm:$0xff]
        %v349 = vld [vmem:[%s286] sm:$0xff]
        %353 = vrot.lane.b32.xlu0 %v347, 126
        %v354 = vpop.permute.xlu0 %353
        %355 = vrot.lane.b32.xlu0 %v348, 126
        %v356 = vpop.permute.xlu0 %355
        %357 = vrot.lane.b32.xlu0 %v349, 126
        %v358 = vpop.permute.xlu0 %357
        %vm359 = vcmask 1031168
        %v360 = vsel %vm359, %v354, %v356
        %v361 = vsel %vm359, %v356, %v358
        %364 = vrot.lane.b32.xlu0 %v347, 124
        %v365 = vpop.permute.xlu0 %364
        %366 = vrot.lane.b32.xlu0 %v348, 124
        %v367 = vpop.permute.xlu0 %366
        %368 = vrot.lane.b32.xlu0 %v349, 124
        %v369 = vpop.permute.xlu0 %368
        %vm370 = vcmask 1014784
        %v371 = vsel %vm370, %v365, %v367
        %v372 = vsel %vm370, %v367, %v369
        %375 = vrot.lane.b32.xlu0 %v347, 122
        %v376 = vpop.permute.xlu0 %375
        %377 = vrot.lane.b32.xlu0 %v348, 122
        %v378 = vpop.permute.xlu0 %377
        %379 = vrot.lane.b32.xlu0 %v349, 122
        %v380 = vpop.permute.xlu0 %379
        %vm381 = vcmask 998400
        %v382 = vsel %vm381, %v376, %v378
        %v383 = vsel %vm381, %v378, %v380
        %386 = vrot.lane.b32.xlu0 %v347, 120
        %v387 = vpop.permute.xlu0 %386
        %388 = vrot.lane.b32.xlu0 %v348, 120
        %v389 = vpop.permute.xlu0 %388
        %390 = vrot.lane.b32.xlu0 %v349, 120
        %v391 = vpop.permute.xlu0 %390
        %vm392 = vcmask 982016
        %v393 = vsel %vm392, %v387, %v389
        %v394 = vsel %vm392, %v389, %v391
        %v397 = vld [vmem:[%s337] sm:$0xff]
        %v398 = vld [vmem:[%s337 + $0x8] sm:$0xff]
        %v399 = vld [vmem:[%s343] sm:$0xff]
        %v400 = vld [vmem:[%s343 + $0x8] sm:$0xff]
        %402 = vset.pattern.permute.xlu0 0
        %403 = vperm.xlu0 %402, %v399
        %v404 = vpop.permute.xlu0 %403
        %407 = vset.pattern.permute.xlu0 0
        %408 = vperm.xlu0 %407, %v400
        %v409 = vpop.permute.xlu0 %408
        %vm411 = vcmask 326656
        %v413 = vsel %vm411, %v397, 0
        %v416 = vsel %vm411, %v398, 0
        %418 = vmatprep.subr.mxu0 0.0
        %419 = vmatpush1.msra.mxu0 0.0
        %420 = vmatprep.subr.mxu0 0.0
        %421 = vmatpush1.msra.mxu0 0.0
        %422 = vmatprep.subr.mxu0 0.0
        %423 = vmatpush1.msra.mxu0 0.0
        %424 = vmatprep.subr.mxu0 0.0
        %425 = vmatpush1.msra.mxu0 0.0
        %426 = vmatprep.subr.mxu0 0.0
        %427 = vmatpush1.msra.mxu0 0.0
        %428 = vmatprep.subr.mxu0 0.0
        %429 = vmatpush1.msra.mxu0 0.0
        %430 = vmatprep.subr.mxu0 0.0
        %431 = vmatpush1.msra.mxu0 0.0
        %432 = vmatprep.subr.mxu0 0.0
        %433 = vmatpush1.msra.mxu0 0.0
        %434 = vmatprep.subr.mxu0 0.0
        %435 = vmatpush1.msra.mxu0 0.0
        %436 = vmatprep.subr.mxu0 0.0
        %437 = vmatpush1.msra.mxu0 0.0
        %438 = vmatprep.subr.mxu0 0.0
        %439 = vmatpush1.msra.mxu0 0.0
        %440 = vmatprep.subr.mxu0 %v394
        %441 = vmatpush1.msra.mxu0 %v393
        %442 = vmatprep.subr.mxu0 %v383
        %443 = vmatpush1.msra.mxu0 %v382
        %444 = vmatprep.subr.mxu0 %v372
        %445 = vmatpush1.msra.mxu0 %v371
        %446 = vmatprep.subr.mxu0 %v361
        %447 = vmatpush1.msra.mxu0 %v360
        %448 = vmatprep.subr.mxu0 %v348
        %449 = vmatpush1.msra.mxu0 %v347
        %450 = vmatprep.subr.mxu0 0.0
        %451 = vmatpush2.msra.mxu0 0.0
        %452 = vmatprep.subr.mxu0 0.0
        %453 = vmatpush2.msra.mxu0 0.0
        %454 = vmatprep.subr.mxu0 0.0
        %455 = vmatpush2.msra.mxu0 0.0
        %456 = vmatprep.subr.mxu0 0.0
        %457 = vmatpush2.msra.mxu0 0.0
        %458 = vmatprep.subr.mxu0 0.0
        %459 = vmatpush2.msra.mxu0 0.0
        %460 = vmatprep.subr.mxu0 0.0
        %461 = vmatpush2.msra.mxu0 0.0
        %462 = vmatprep.subr.mxu0 0.0
        %463 = vmatpush2.msra.mxu0 0.0
        %464 = vmatprep.subr.mxu0 0.0
        %465 = vmatpush2.msra.mxu0 0.0
        %466 = vmatprep.subr.mxu0 0.0
        %467 = vmatpush2.msra.mxu0 0.0
        %468 = vmatprep.subr.mxu0 0.0
        %469 = vmatpush2.msra.mxu0 0.0
        %470 = vmatprep.subr.mxu0 0.0
        %471 = vmatpush2.msra.mxu0 0.0
        %472 = vmatprep.subr.mxu0 0.0
        %473 = vmatpush2.msra.mxu0 0.0
        %474 = vmatprep.subr.mxu0 0.0
        %475 = vmatpush2.msra.mxu0 0.0
        %476 = vmatprep.subr.mxu0 0.0
        %477 = vmatpush2.msra.mxu0 0.0
        %478 = vmatprep.subr.mxu0 0.0
        %479 = vmatpush2.msra.mxu0 0.0
        %480 = vmatprep.subr.mxu0 0.0
        %481 = vmatpush2.msra.mxu0 0.0
        %482 = vmatprep.mubr.f32.mxu0 0.0
        %483 = vmatmul.mubr.f32.gmra.mxu0 %v413
        %v484 = vpop.f32.mrf.mxu0
        %v485 = vadd.f32 %v404, %v484
        %v486 = vpop.f32.mrf.mxu0
        %v487 = vadd.f32 %v404, %v486
        %488 = vmatprep.mubr.f32.mxu0 0.0
        %489 = vmatmul.mubr.f32.gmra.mxu0 %v416
        %v490 = vpop.f32.mrf.mxu0
        %v491 = vadd.f32 %v409, %v490
        %v492 = vpop.f32.mrf.mxu0
        %v493 = vadd.f32 %v409, %v492
        %494 = vdwg.mxu0
        %495 = vst [vmem:[%s325] sm:$0xff] %v485
        %496 = vst [vmem:[%s325 + $0x8] sm:$0xff] %v487
        %497 = vst [vmem:[%s325 + $0x10] sm:$0xff] %v491
        %498 = vst [vmem:[%s325 + $0x18] sm:$0xff] %v493
        %s499 = sand.u32 %s167, 1
        %s500 = scalar_lea.sflag [#allocation4], %s499
        %s501 = sand.u32 %s167, 1
        %s502 = smul.addr %s501, 32
        %s503 = scalar_lea.vmem [#allocation7], %s502
        // Predicated region
        $region45: #{tpu_custom_call.1} parent=35 // pred_check
          %p504 = pneg %p177
        $region46: #{tpu_custom_call.1} parent=35 // pred_check_branch
          %506 = sbr.rel (%p504) target = $region48
        $region47: #{tpu_custom_call.1} parent=35 // pred_region
          %s507 = smul.u32 2, %s30
          %s508 = smul.u32 2, %s31
          %s510 = ssub.s32 512, 512
          %511 = vsyncadd %s500, %s510
          %s512 = smul.addr %s507, 6
          %s513 = sadd.s32 %s508, %s512
          %s514 = smul.addr %s29, 12
          %s515 = sadd.s32 %s513, %s514
          %s516 = smul.addr %s515, 128
          %s517 = scalar_lea.hbm %s4, %s516
          %s518 = sshll.u32 %s503, 4
          %s519 = int_to_ptr.vmem [resolvable:$true] %s518
          %524 = dma.vmem_to_hbm [thread:$0]  %s519, 512, %s517, %s500, 256, 768, 16
        $region48: #{tpu_custom_call.1} parent=35 // pred_fallthru
          _
      $region36: #{tpu_custom_call.1} parent=5 // pred_fallthru
        _
      %p525 = scmp.le.s32.totalorder 2, %s19
      // Predicated region
      $region49: #{tpu_custom_call.1} parent=5 // pred_check
        %p526 = pneg %p525
      $region50: #{tpu_custom_call.1} parent=5 // pred_check_branch
        %528 = sbr.rel (%p526) target = $region52
      $region51: #{tpu_custom_call.1} parent=5 // pred_region
        %s529 = ssub.s32 %s19, 2
        // Predicated region
        $region53: #{tpu_custom_call.1} parent=51 // pred_check
          %p530 = pneg %p183
        $region54: #{tpu_custom_call.1} parent=51 // pred_check_branch
          %532 = sbr.rel (%p530) target = $region56
        $region55: #{tpu_custom_call.1} parent=51 // pred_region
          %s533 = sand.u32 %s168, 1
          %s534 = scalar_lea.sflag [#allocation4], %s533
          %s535 = sand.u32 %s168, 1
          %s536 = smul.addr %s535, 32
          %s537 = scalar_lea.vmem [#allocation7], %s536
          %538 = dma.done %s534, 512
        $region56: #{tpu_custom_call.1} parent=51 // pred_fallthru
          _
      $region52: #{tpu_custom_call.1} parent=5 // pred_fallthru
        _
    $region6: #{tpu_custom_call.1} parent=1 // loop_footer
      %s23 = sadd.s32 1, %s19
    $region7: #{tpu_custom_call.1} parent=1 // loop_footer_branch
      %18 = sbr.rel target = $region3
    $region8: #{tpu_custom_call.1} parent=1 // loop_exit
      _
    %539 = vsyncpa [#allocation3], 1
    %s540 = scalar_lea.sflag [#allocation3], 1
    %541 = vsyncpa %s540, 1
    %542 = vsyncpa [#allocation6], 1
    %s543 = scalar_lea.sflag [#allocation6], 1
    %544 = vsyncpa %s543, 1
    %545 = vsyncpa [#allocation4], 1
    %s546 = scalar_lea.sflag [#allocation4], 1
    %547 = vsyncpa %s546, 1

</llo_original>
